<compile_context>
chip_gen: v5e
topology: v5e:2x2
jax: 0.10.0
libtpu: 0.0.40
codegen_flags: <defaults>
</compile_context>

<pallas_src>
import functools
import math

import jax
import jax.numpy as jnp
from jax.experimental import pallas as pl
from jax.experimental.pallas import tpu as pltpu


def _round_up(n: int, m: int) -> int:
    return ((n + m - 1) // m) * m


def _cdiv(a: int, b: int) -> int:
    return -(-a // b)


# ----------------------------------------------------------------------------
# Pallas kernels
# ----------------------------------------------------------------------------
def _ffn_eval_single(x_ref, w1t_ref, b1_ref, w2t_ref, b2_ref, o_ref):
    # Fast path: weights fully resident, single d_ff chunk, direct store.
    h = jnp.dot(x_ref[...], w1t_ref[...], preferred_element_type=jnp.float32)
    h = jnp.maximum(h + b1_ref[...], 0.0)
    out = jnp.dot(h.astype(w2t_ref.dtype), w2t_ref[...],
                  preferred_element_type=jnp.float32)
    o_ref[...] = (out + b2_ref[...]).astype(o_ref.dtype)


def _ffn_train_single(seed_ref, x_ref, w1t_ref, b1_ref, w2t_ref, b2_ref, o_ref,
                      *, keep_threshold: int, inv_keep: float):
    i = pl.program_id(0)
    h = jnp.dot(x_ref[...], w1t_ref[...], preferred_element_type=jnp.float32)
    h = h + b1_ref[...]
    # Inverted dropout, ReLU fused into the select (keep iff bits < keep_p*2^32
    # AND pre-activation > 0); 1/keep_p scale deferred to the epilogue.
    pltpu.prng_seed(seed_ref[0], i)
    bits = pltpu.bitcast(pltpu.prng_random_bits(h.shape), jnp.uint32)
    keep = (bits < jnp.uint32(keep_threshold)) & (h > 0.0)
    h = jnp.where(keep, h, 0.0)
    out = jnp.dot(h.astype(w2t_ref.dtype), w2t_ref[...],
                  preferred_element_type=jnp.float32)
    o_ref[...] = (out * jnp.float32(inv_keep) + b2_ref[...]).astype(o_ref.dtype)


def _ffn_eval_acc(x_ref, w1t_ref, b1_ref, w2t_ref, b2_ref, o_ref, acc_ref):
    # Chunked path: d_ff split over grid axis 1, accumulate in f32 VMEM scratch.
    k = pl.program_id(1)

    @pl.when(k == 0)
    def _():
        acc_ref[...] = jnp.zeros_like(acc_ref)

    h = jnp.dot(x_ref[...], w1t_ref[...], preferred_element_type=jnp.float32)
    h = jnp.maximum(h + b1_ref[...], 0.0)
    acc_ref[...] += jnp.dot(h.astype(w2t_ref.dtype), w2t_ref[...],
                            preferred_element_type=jnp.float32)

    @pl.when(k == pl.num_programs(1) - 1)
    def _():
        o_ref[...] = (acc_ref[...] + b2_ref[...]).astype(o_ref.dtype)


def _ffn_train_acc(seed_ref, x_ref, w1t_ref, b1_ref, w2t_ref, b2_ref, o_ref,
                   acc_ref, *, keep_threshold: int, inv_keep: float):
    i = pl.program_id(0)
    k = pl.program_id(1)

    @pl.when(k == 0)
    def _():
        acc_ref[...] = jnp.zeros_like(acc_ref)

    h = jnp.dot(x_ref[...], w1t_ref[...], preferred_element_type=jnp.float32)
    h = h + b1_ref[...]
    pltpu.prng_seed(seed_ref[0], i, k)
    bits = pltpu.bitcast(pltpu.prng_random_bits(h.shape), jnp.uint32)
    keep = (bits < jnp.uint32(keep_threshold)) & (h > 0.0)
    h = jnp.where(keep, h, 0.0)
    acc_ref[...] += jnp.dot(h.astype(w2t_ref.dtype), w2t_ref[...],
                            preferred_element_type=jnp.float32)

    @pl.when(k == pl.num_programs(1) - 1)
    def _():
        # 1/keep_p distributes over the W2 matmul and the k-sum.
        o_ref[...] = (acc_ref[...] * jnp.float32(inv_keep)
                      + b2_ref[...]).astype(o_ref.dtype)


# ----------------------------------------------------------------------------
# Hardware query (generation-aware VMEM budget / TensorCore count)
# ----------------------------------------------------------------------------
def _tpu_vmem_and_cores():
    kind = ""
    try:
        kind = jax.devices()[0].device_kind.lower()
    except Exception:
        pass
    is_v7 = ("v7" in kind) or ("7x" in kind)
    num_tc = 2 if is_v7 else 1
    vmem = None
    try:
        info = pltpu.get_tpu_info()
        cap = int(getattr(info, "vmem_capacity_bytes", 0))
        if cap > 0:
            vmem = cap
    except Exception:
        vmem = None
    if vmem is None:
        vmem = (64 if is_v7 else 128) * 1024 * 1024
    return vmem, num_tc


# ----------------------------------------------------------------------------
# One-time parameter preparation (amortized across forward calls)
# ----------------------------------------------------------------------------
def prepare_params(params, *, compute_dtype=jnp.bfloat16):
    """Transpose (torch layout -> x @ W.T layout), cast to the MXU compute
    dtype, and zero-pad: d_model to a multiple of 128 (lane-dense), d_ff to a
    multiple of 256 (full-width tiles on the 256x256 MXUs of v6e/v7x)."""
    d_ff, d_model = params["w1"].shape
    d_model_p = _round_up(d_model, 128)
    d_ff_p = _round_up(d_ff, 256)
    w1t = jnp.pad(params["w1"].T.astype(compute_dtype),
                  ((0, d_model_p - d_model), (0, d_ff_p - d_ff)))
    w2t = jnp.pad(params["w2"].T.astype(compute_dtype),
                  ((0, d_ff_p - d_ff), (0, d_model_p - d_model)))
    b1 = jnp.pad(params["b1"].astype(jnp.float32),
                 (0, d_ff_p - d_ff)).reshape(1, d_ff_p)
    b2 = jnp.pad(params["b2"].astype(jnp.float32),
                 (0, d_model_p - d_model)).reshape(1, d_model_p)
    return dict(w1t=w1t, b1=b1, w2t=w2t, b2=b2,
                d_model=d_model, d_ff=d_ff,
                d_model_p=d_model_p, d_ff_p=d_ff_p,
                compute_dtype=compute_dtype)


# ----------------------------------------------------------------------------
# Tiling policy (VMEM-budget driven, generation aware)
# ----------------------------------------------------------------------------
def _choose_tiling(n_rows, d_model_p, d_ff_p, x_bytes, out_bytes,
                   use_dropout, vmem_limit, num_tc):
    rows16 = _round_up(max(n_rows, 1), 16)
    budget = (vmem_limit * 9) // 10               # headroom for compiler temps

    w_bytes = 2 * d_model_p * d_ff_p * 2          # resident W1t + W2t (bf16)
    bias_bytes = (d_ff_p + d_model_p) * 4

    def h_bytes(tm, t_ff):                        # in-kernel intermediates
        b = tm * t_ff * (4 + 2)                   # f32 'h' + bf16 cast copy
        if use_dropout:
            b += tm * t_ff * 4                    # u32 prng bits
        return b

    def io_bytes(tm):                             # double-buffered x / out
        return 2 * tm * d_model_p * (x_bytes + out_bytes)

    tm_cands = [c for c in (1024, 512, 256, 128, 64, 32, 16) if c <= rows16]
    if not tm_cands or tm_cands[0] < rows16:
        tm_cands = [rows16] + tm_cands            # whole-rows tile first

    tm_sel, tff_sel = None, None

    # 1) Resident-weights path: single d_ff chunk, weights fetched once.
    for tm in tm_cands:
        if w_bytes + bias_bytes + io_bytes(tm) + h_bytes(tm, d_ff_p) <= budget:
            tm_sel, tff_sel = tm, d_ff_p
            break

    # 2) Chunked path: weights double-buffered per 256-multiple d_ff chunk,
    #    f32 accumulator scratch.  Prefer the largest tm (weight traffic per
    #    row scales with 1/tm), then the largest fitting t_ff.
    if tm_sel is None:
        ff_cands = [c for c in range(d_ff_p, 255, -256) if d_ff_p % c == 0]
        for tm in tm_cands:
            for t_ff in ff_cands:
                per = 2 * 2 * d_model_p * t_ff * 2      # W1/W2 chunks, 2 bufs
                per += 2 * t_ff * 4 + d_model_p * 4     # biases
                per += io_bytes(tm)
                per += tm * d_model_p * 4               # f32 accumulator
                per += h_bytes(tm, t_ff)
                if per <= budget:
                    tm_sel, tff_sel = tm, t_ff
                    break
            if tm_sel is not None:
                break
    if tm_sel is None:                                   # last resort
        tm_sel, tff_sel = min(16, rows16), 256

    # Only 2-TensorCore parts (v7x) benefit from splitting the "parallel" row
    # axis; keep the tile count even / balanced there, single big tile elsewhere.
    if num_tc >= 2 and rows16 >= 32:
        n_tiles = _cdiv(rows16, tm_sel)
        if n_tiles % 2 != 0:
            n_tiles += 1
            tm_sel = _round_up(_cdiv(rows16, n_tiles), 16)
    return tm_sel, tff_sel


# ----------------------------------------------------------------------------
# Forward wrapper
# ----------------------------------------------------------------------------
def feed_forward_block(x, prep, *, dropout_p=0.1, training=False, seed=0,
                       row_tile=None, ff_tile=None):
    """x: (..., d_model).  prep: output of prepare_params()."""
    d_model, d_model_p = prep["d_model"], prep["d_model_p"]
    d_ff_p = prep["d_ff_p"]
    cdtype = prep["compute_dtype"]
    cbytes = jnp.dtype(cdtype).itemsize
    out_dtype = x.dtype
    obytes = jnp.dtype(out_dtype).itemsize

    lead_shape = x.shape[:-1]
    x2d = x.reshape(-1, d_model)
    n_rows = x2d.shape[0]

    use_dropout = bool(training) and float(dropout_p) > 0.0

    vmem_phys, num_tc = _tpu_vmem_and_cores()
    vmem_limit = min(100 * 1024 * 1024, (vmem_phys * 3) // 4)

    tm, t_ff = _choose_tiling(n_rows, d_model_p, d_ff_p, cbytes, obytes,
                              use_dropout, vmem_limit, num_tc)
    if row_tile is not None:
        tm = min(_round_up(max(int(row_tile), 16), 16), _round_up(n_rows, 16))
    if ff_tile is not None:
        ff_tile = int(ff_tile)
        assert d_ff_p % ff_tile == 0 and ff_tile % 128 == 0, "invalid ff_tile"
        t_ff = ff_tile

    n_ff_tiles = d_ff_p // t_ff
    multi = n_ff_tiles > 1
    rows_p = _cdiv(_round_up(n_rows, 16), tm) * tm
    n_row_tiles = rows_p // tm

    # Pad / cast x only when actually needed (skip the extra HBM pass when the
    # activation is already aligned and in the compute dtype).
    if rows_p != n_rows or d_model_p != d_model:
        x2d = jnp.pad(x2d, ((0, rows_p - n_rows), (0, d_model_p - d_model)))
    if x2d.dtype != cdtype:
        x2d = x2d.astype(cdtype)

    out_shape = jax.ShapeDtypeStruct((rows_p, d_model_p), out_dtype)

    w_stream = 2 * d_model_p * d_ff_p * 2 * (n_row_tiles if multi else 1)
    cost = pl.CostEstimate(
        flops=int(4 * rows_p * d_model_p * d_ff_p),
        transcendentals=0,
        bytes_accessed=int(rows_p * d_model_p * (cbytes + obytes)
                           + w_stream + (d_ff_p + d_model_p) * 4))

    cparams = pltpu.CompilerParams(
        dimension_semantics=(("parallel", "arbitrary") if multi
                             else ("parallel",)),
        vmem_limit_bytes=int(vmem_limit))

    # Index maps (train variants take the scalar-prefetch seed ref as a
    # trailing positional argument).
    if not use_dropout:
        if multi:
            maps = dict(x=lambda i, k: (i, 0), w1=lambda i, k: (0, k),
                        b1=lambda i, k: (0, k), w2=lambda i, k: (k, 0),
                        b2=lambda i, k: (0, 0), o=lambda i, k: (i, 0))
        else:
            maps = dict(x=lambda i: (i, 0), w1=lambda i: (0, 0),
                        b1=lambda i: (0, 0), w2=lambda i: (0, 0),
                        b2=lambda i: (0, 0), o=lambda i: (i, 0))
    else:
        if multi:
            maps = dict(x=lambda i, k, s: (i, 0), w1=lambda i, k, s: (0, k),
                        b1=lambda i, k, s: (0, k), w2=lambda i, k, s: (k, 0),
                        b2=lambda i, k, s: (0, 0), o=lambda i, k, s: (i, 0))
        else:
            maps = dict(x=lambda i, s: (i, 0), w1=lambda i, s: (0, 0),
                        b1=lambda i, s: (0, 0), w2=lambda i, s: (0, 0),
                        b2=lambda i, s: (0, 0), o=lambda i, s: (i, 0))

    def _spec(shape, idx_map, constant):
        # Grid-invariant blocks need no second pipeline buffer.
        if constant:
            return pl.BlockSpec(shape, idx_map, pipeline_mode=pl.Buffered(1))
        return pl.BlockSpec(shape, idx_map)

    in_specs = [
        _spec((tm, d_model_p), maps["x"], False),
        _spec((d_model_p, t_ff), maps["w1"], not multi),
        _spec((1, t_ff), maps["b1"], not multi),
        _spec((t_ff, d_model_p), maps["w2"], not multi),
        _spec((1, d_model_p), maps["b2"], True),
    ]
    out_spec = pl.BlockSpec((tm, d_model_p), maps["o"])
    grid = (n_row_tiles, n_ff_tiles) if multi else (n_row_tiles,)
    scratch = ([pltpu.VMEM((tm, d_model_p), jnp.float32)] if multi else [])

    if not use_dropout:
        kernel = _ffn_eval_acc if multi else _ffn_eval_single
        args = (x2d, prep["w1t"], prep["b1"], prep["w2t"], prep["b2"])
        nsp = 0
    else:
        keep_p = 1.0 - float(dropout_p)
        keep_threshold = min(int(round(keep_p * (2 ** 32))), 2 ** 32 - 1)
        base = _ffn_train_acc if multi else _ffn_train_single
        kernel = functools.partial(base, keep_threshold=keep_threshold,
                                   inv_keep=1.0 / keep_p)
        seed_arr = jnp.array([seed], dtype=jnp.int32)
        args = (seed_arr, x2d, prep["w1t"], prep["b1"], prep["w2t"],
                prep["b2"])
        nsp = 1

    out2d = pl.pallas_call(
        kernel,
        out_shape=out_shape,
        grid_spec=pltpu.PrefetchScalarGridSpec(
            num_scalar_prefetch=nsp, grid=grid,
            in_specs=in_specs, out_specs=out_spec,
            scratch_shapes=scratch),
        compiler_params=cparams,
        cost_estimate=cost,
    )(*args)

    if rows_p != n_rows or d_model_p != d_model:
        out2d = out2d[:n_rows, :d_model]
    return out2d.reshape(*lead_shape, d_model)


# ----------------------------------------------------------------------------
# Deterministic parameter init (mimics PyTorch nn.Linear default init bounds)
# ----------------------------------------------------------------------------
def init_params(key, d_model, d_ff, dtype=jnp.float32):
    k1, k2, k3, k4 = jax.random.split(key, 4)
    bound1 = 1.0 / math.sqrt(d_model)
    bound2 = 1.0 / math.sqrt(d_ff)
    return {
        "w1": jax.random.uniform(k1, (d_ff, d_model), dtype, -bound1, bound1),
        "b1": jax.random.uniform(k2, (d_ff,), dtype, -bound1, bound1),
        "w2": jax.random.uniform(k3, (d_model, d_ff), dtype, -bound2, bound2),
        "b2": jax.random.uniform(k4, (d_model,), dtype, -bound2, bound2),
    }


def _reference(x, params):
    # Pure-JAX f32 reference of the eval-mode forward pass.
    h = jnp.maximum(x @ params["w1"].T + params["b1"], 0.0)
    return h @ params["w2"].T + params["b2"]


if __name__ == "__main__":
    batch, seq, d_model, d_ff = 2, 8, 32, 64
    dropout_p = 0.1

    key = jax.random.PRNGKey(0)
    kx, kp = jax.random.split(key)
    x = jax.random.normal(kx, (batch, seq, d_model), dtype=jnp.float32)
    params = init_params(kp, d_model, d_ff)
    prep = prepare_params(params)

    # Eval-mode forward (dropout is identity, matching module.eval()) —
    # exercises the resident-weights fast path.
    out = feed_forward_block(x, prep, dropout_p=dropout_p, training=False)
    out = jax.block_until_ready(out)
    ref = _reference(x, params)
    assert out.shape == (batch, seq, d_model)
    # bf16 MXU with f32 accumulation -> compare with bf16-sized tolerance.
    assert jnp.allclose(out, ref, atol=5e-2, rtol=5e-2), "mismatch (single)"

    # Also exercise the chunked (d_ff-split, accumulator) path by forcing a
    # 256-wide d_ff tile on a d_ff=512 layer.
    params2 = init_params(jax.random.PRNGKey(1), d_model, 512)
    prep2 = prepare_params(params2)
    out2 = feed_forward_block(x, prep2, dropout_p=dropout_p, training=False,
                              ff_tile=256)
    out2 = jax.block_until_ready(out2)
    ref2 = _reference(x, params2)
    assert out2.shape == (batch, seq, d_model)
    assert jnp.allclose(out2, ref2, atol=5e-2, rtol=5e-2), "mismatch (chunked)"

    # Training-mode forward uses the TPU hardware PRNG; only exercise it on a
    # real TPU backend (no CPU/interpret lowering exists for prng_seed).
    if jax.default_backend() == "tpu":
        out_tr = feed_forward_block(x, prep, dropout_p=dropout_p,
                                    training=True, seed=123)
        out_tr = jax.block_until_ready(out_tr)
        assert out_tr.shape == (batch, seq, d_model)
        assert bool(jnp.all(jnp.isfinite(out_tr)))
        out_tr2 = feed_forward_block(x, prep2, dropout_p=dropout_p,
                                     training=True, seed=7, ff_tile=256)
        out_tr2 = jax.block_until_ready(out_tr2)
        assert out_tr2.shape == (batch, seq, d_model)
    # TODO(synk): train-mode dropout uses the TPU hardware PRNG, so its mask
    # differs bit-for-bit from torch.nn.Dropout's RNG stream (semantics match:
    # keep-prob 1-p, scaled by 1/(1-p)); the mask also depends on the tiling.

    print("KERNEL_OK")
</pallas_src>

<mosaic_0001>
module attributes {stable_mosaic.version = 11 : i64} {
  func.func @_ffn_eval_single(%arg0: i32, %arg1: memref<16x128xbf16, #tpu.memory_space<vmem>>, %arg2: memref<128x256xbf16, #tpu.memory_space<vmem>>, %arg3: memref<1x256xf32, #tpu.memory_space<vmem>>, %arg4: memref<256x128xbf16, #tpu.memory_space<vmem>>, %arg5: memref<1x128xf32, #tpu.memory_space<vmem>>, %arg6: memref<16x128xf32, #tpu.memory_space<vmem>>) attributes {dimension_semantics = [#tpu.dimension_semantics<parallel>], iteration_bounds = array<i64: 1>, scalar_prefetch = 0 : i64, scratch_operands = 0 : i64, tpu.core_type = #tpu.core_type<tc>, window_params = [{transform_indices = @transform_0, window_bounds = array<i64: 16, 128>}, {pipeline_mode = #tpu.pipeline_mode<synchronous>, transform_indices = @transform_1, window_bounds = array<i64: 128, 256>}, {pipeline_mode = #tpu.pipeline_mode<synchronous>, transform_indices = @transform_2, window_bounds = array<i64: 1, 256>}, {pipeline_mode = #tpu.pipeline_mode<synchronous>, transform_indices = @transform_3, window_bounds = array<i64: 256, 128>}, {pipeline_mode = #tpu.pipeline_mode<synchronous>, transform_indices = @transform_4, window_bounds = array<i64: 1, 128>}, {transform_indices = @transform_5, window_bounds = array<i64: 16, 128>}]} {
    %c0 = arith.constant 0 : index
    %c0_0 = arith.constant 0 : index
    %0 = vector.load %arg1[%c0, %c0_0] : memref<16x128xbf16, #tpu.memory_space<vmem>>, vector<16x128xbf16>
    %c0_1 = arith.constant 0 : index
    %c0_2 = arith.constant 0 : index
    %1 = vector.load %arg2[%c0_1, %c0_2] : memref<128x256xbf16, #tpu.memory_space<vmem>>, vector<128x256xbf16>
    %cst = arith.constant dense<0.000000e+00> : vector<16x256xf32>
    %2 = tpu.matmul %0, %1, %cst {dimension_numbers = #tpu.dot_dimension_numbers<[1], [0], [0], [1], [0, 0, 1, 1], [], []>} : vector<16x128xbf16>, vector<128x256xbf16>, vector<16x256xf32> -> vector<16x256xf32>
    %c0_3 = arith.constant 0 : index
    %c0_4 = arith.constant 0 : index
    %3 = vector.load %arg3[%c0_3, %c0_4] : memref<1x256xf32, #tpu.memory_space<vmem>>, vector<1x256xf32>
    %4 = vector.broadcast %3 : vector<1x256xf32> to vector<16x256xf32>
    %5 = arith.addf %2, %4 : vector<16x256xf32>
    %cst_5 = arith.constant 0.000000e+00 : f32
    %6 = vector.broadcast %cst_5 : f32 to vector<16x256xf32>
    %7 = arith.maximumf %5, %6 : vector<16x256xf32>
    %8 = arith.truncf %7 : vector<16x256xf32> to vector<16x256xbf16>
    %c0_6 = arith.constant 0 : index
    %c0_7 = arith.constant 0 : index
    %9 = vector.load %arg4[%c0_6, %c0_7] : memref<256x128xbf16, #tpu.memory_space<vmem>>, vector<256x128xbf16>
    %cst_8 = arith.constant dense<0.000000e+00> : vector<16x128xf32>
    %10 = tpu.matmul %8, %9, %cst_8 {dimension_numbers = #tpu.dot_dimension_numbers<[1], [0], [0], [1], [0, 0, 1, 1], [], []>} : vector<16x256xbf16>, vector<256x128xbf16>, vector<16x128xf32> -> vector<16x128xf32>
    %c0_9 = arith.constant 0 : index
    %c0_10 = arith.constant 0 : index
    %11 = vector.load %arg5[%c0_9, %c0_10] : memref<1x128xf32, #tpu.memory_space<vmem>>, vector<1x128xf32>
    %12 = vector.broadcast %11 : vector<1x128xf32> to vector<16x128xf32>
    %13 = arith.addf %10, %12 : vector<16x128xf32>
    %c0_11 = arith.constant 0 : index
    %c0_12 = arith.constant 0 : index
    %14 = vector.load %arg6[%c0_11, %c0_12] : memref<16x128xf32, #tpu.memory_space<vmem>>, vector<16x128xf32>
    tpu.vector_store %arg6[%c0_11, %c0_12], %13 {strides = array<i32>} : memref<16x128xf32, #tpu.memory_space<vmem>>, vector<16x128xf32>,
    return
  }
  func.func @transform_0(%arg0: i32) -> (i32, i32) {
    %c0_i32 = arith.constant 0 : i32
    %c0_i32_0 = arith.constant 0 : i32
    return %arg0, %c0_i32 : i32, i32
  }
  func.func @transform_1(%arg0: i32) -> (i32, i32) {
    %c0_i32 = arith.constant 0 : i32
    %c0_i32_0 = arith.constant 0 : i32
    %c0_i32_1 = arith.constant 0 : i32
    return %c0_i32, %c0_i32_0 : i32, i32
  }
  func.func @transform_2(%arg0: i32) -> (i32, i32) {
    %c0_i32 = arith.constant 0 : i32
    %c0_i32_0 = arith.constant 0 : i32
    %c0_i32_1 = arith.constant 0 : i32
    return %c0_i32, %c0_i32_0 : i32, i32
  }
  func.func @transform_3(%arg0: i32) -> (i32, i32) {
    %c0_i32 = arith.constant 0 : i32
    %c0_i32_0 = arith.constant 0 : i32
    %c0_i32_1 = arith.constant 0 : i32
    return %c0_i32, %c0_i32_0 : i32, i32
  }
  func.func @transform_4(%arg0: i32) -> (i32, i32) {
    %c0_i32 = arith.constant 0 : i32
    %c0_i32_0 = arith.constant 0 : i32
    %c0_i32_1 = arith.constant 0 : i32
    return %c0_i32, %c0_i32_0 : i32, i32
  }
  func.func @transform_5(%arg0: i32) -> (i32, i32) {
    %c0_i32 = arith.constant 0 : i32
    %c0_i32_0 = arith.constant 0 : i32
    return %arg0, %c0_i32 : i32, i32
  }
}

</mosaic_0001>

<llo_original>
// kernel: tpu_custom_call.1
$region0: #{tpu_custom_call.1}
  #allocation0 [shape = 'u32[]', space=smem, size = 0x4, offset = 0x4, fixed_abs, tag = 'smem constant byte address 0x4 - core index']
  #allocation1 [shape = 'u32[72,128]{1,0:T(1,128)}', space=vmem, size = 0x9000, scoped, tag = 'internal scratch']
  %s0 = inlined_call_operand.hbm [shape: bf16[16,128], index: 0, kind: input, shape index: {}]
  %s1 = inlined_call_operand.hbm [shape: bf16[128,256], index: 1, kind: input, shape index: {}]
  %s2 = inlined_call_operand.hbm [shape: f32[1,256], index: 2, kind: input, shape index: {}]
  %s3 = inlined_call_operand.hbm [shape: bf16[256,128], index: 3, kind: input, shape index: {}]
  %s4 = inlined_call_operand.vmem [shape: f32[1,128], index: 4, kind: input, shape index: {}]
  %s5 = inlined_call_operand.hbm [shape: f32[16,128], index: 5, kind: output, shape index: {}]
  %s6 = sld [smem:[#allocation0]]
  $region46: #{tpu_custom_call.1} parent=0
    _
  %s8 = ssub.s32 1, %s6
  %s9 = scalar_select 0, %s8, %s6
  $region1: #{tpu_custom_call.1} parent=0
    #allocation2 [shape = 'u8[4096]{0}', space=vmem, size = 0x1000, scoped, tag = 'input window, operand 0, single buffered']
    #allocation3 [shape = 's32[1]{0}', space=sflag, size = 0x4, scoped, tag = 'scoped memory for tpu_custom_call.1']
    #allocation4 [shape = 's32[1]{0}', space=sflag, size = 0x4, scoped, tag = 'scoped memory for tpu_custom_call.1']
    #allocation5 [shape = 'u8[65536]{0}', space=vmem, size = 0x10000, scoped, tag = 'input window, operand 1, single buffered']
    #allocation6 [shape = 's32[1]{0}', space=sflag, size = 0x4, scoped, tag = 'scoped memory for tpu_custom_call.1']
    #allocation7 [shape = 'u8[1024]{0}', space=vmem, size = 0x400, scoped, tag = 'input window, operand 2, single buffered']
    #allocation8 [shape = 'u8[65536]{0}', space=vmem, size = 0x10000, scoped, tag = 'input window, operand 3, single buffered']
    #allocation9 [shape = 's32[1]{0}', space=sflag, size = 0x4, scoped, tag = 'scoped memory for tpu_custom_call.1']
    #allocation10 [shape = 'u8[8192]{0}', space=vmem, size = 0x2000, scoped, tag = 'output window, operand 0, single buffered']
    %10 = vsyncpa [#allocation3], 0
    %11 = vsyncpa [#allocation6], 0
    %12 = vsyncpa [#allocation9], 0
    %13 = vsyncpa [#allocation4], 0
    // Predicated region
    $region2: #{tpu_custom_call.1} parent=1 // pred_check
      _
    $region3: #{tpu_custom_call.1} parent=1 // pred_check_branch
      %15 = sbr.rel (0) target = $region5
    $region4: #{tpu_custom_call.1} parent=1 // pred_region
      %17 = vsyncadd [#allocation3], 0
      %s18 = sshll.u32 %s0, 4
      %s19 = int_to_ptr.hbm [resolvable:$true] %s18
      %s20 = sshll.u32 [#allocation2], 4
      %s21 = int_to_ptr.vmem [resolvable:$true] %s20
      %26 = dma.hbm_to_vmem [thread:$0]  %s19, 128, %s21, [#allocation3], 64, 64, 4
    $region5: #{tpu_custom_call.1} parent=1 // pred_fallthru
      _
    // Predicated region
    $region6: #{tpu_custom_call.1} parent=1 // pred_check
      _
    $region7: #{tpu_custom_call.1} parent=1 // pred_check_branch
      %28 = sbr.rel (0) target = $region9
    $region8: #{tpu_custom_call.1} parent=1 // pred_region
      %30 = vsyncadd [#allocation6], 0
      %s31 = sshll.u32 %s1, 4
      %s32 = int_to_ptr.hbm [resolvable:$true] %s31
      %s33 = sshll.u32 [#allocation5], 4
      %s34 = int_to_ptr.vmem [resolvable:$true] %s33
      %39 = dma.hbm_to_vmem [thread:$0]  %s32, 2048, %s34, [#allocation6], 128, 128, 8
    $region9: #{tpu_custom_call.1} parent=1 // pred_fallthru
      _
    // Predicated region
    $region10: #{tpu_custom_call.1} parent=1 // pred_check
      _
    $region11: #{tpu_custom_call.1} parent=1 // pred_check_branch
      %41 = sbr.rel (0) target = $region13
    $region12: #{tpu_custom_call.1} parent=1 // pred_region
      %43 = vsyncadd [#allocation6], 0
      %s45 = sshll.u32 %s2, 4
      %s46 = int_to_ptr.hbm [resolvable:$true] %s45
      %s47 = sshll.u32 [#allocation7], 4
      %s48 = int_to_ptr.vmem [resolvable:$true] %s47
      %50 = dma.hbm_to_vmem [thread:$0]  %s46, 32, %s48, [#allocation6]
    $region13: #{tpu_custom_call.1} parent=1 // pred_fallthru
      _
    // Predicated region
    $region14: #{tpu_custom_call.1} parent=1 // pred_check
      _
    $region15: #{tpu_custom_call.1} parent=1 // pred_check_branch
      %52 = sbr.rel (0) target = $region17
    $region16: #{tpu_custom_call.1} parent=1 // pred_region
      %54 = vsyncadd [#allocation9], 0
      %s55 = sshll.u32 %s3, 4
      %s56 = int_to_ptr.hbm [resolvable:$true] %s55
      %s57 = sshll.u32 [#allocation8], 4
      %s58 = int_to_ptr.vmem [resolvable:$true] %s57
      %63 = dma.hbm_to_vmem [thread:$0]  %s56, 2048, %s58, [#allocation9], 64, 64, 4
    $region17: #{tpu_custom_call.1} parent=1 // pred_fallthru
      _
    // Predicated region
    $region18: #{tpu_custom_call.1} parent=1 // pred_check
      _
    $region19: #{tpu_custom_call.1} parent=1 // pred_check_branch
      %65 = sbr.rel (0) target = $region21
    $region20: #{tpu_custom_call.1} parent=1 // pred_region
      _
    $region21: #{tpu_custom_call.1} parent=1 // pred_fallthru
      _
    // Predicated region
    $region22: #{tpu_custom_call.1} parent=1 // pred_check
      _
    $region23: #{tpu_custom_call.1} parent=1 // pred_check_branch
      %67 = sbr.rel (0) target = $region25
    $region24: #{tpu_custom_call.1} parent=1 // pred_region
      %69 = dma.done [#allocation3], 128
    $region25: #{tpu_custom_call.1} parent=1 // pred_fallthru
      _
    // Predicated region
    $region26: #{tpu_custom_call.1} parent=1 // pred_check
      _
    $region27: #{tpu_custom_call.1} parent=1 // pred_check_branch
      %71 = sbr.rel (0) target = $region29
    $region28: #{tpu_custom_call.1} parent=1 // pred_region
      %73 = dma.done [#allocation6], 2048
    $region29: #{tpu_custom_call.1} parent=1 // pred_fallthru
      _
    // Predicated region
    $region30: #{tpu_custom_call.1} parent=1 // pred_check
      _
    $region31: #{tpu_custom_call.1} parent=1 // pred_check_branch
      %75 = sbr.rel (0) target = $region33
    $region32: #{tpu_custom_call.1} parent=1 // pred_region
      %77 = dma.done [#allocation6], 32
    $region33: #{tpu_custom_call.1} parent=1 // pred_fallthru
      _
    // Predicated region
    $region34: #{tpu_custom_call.1} parent=1 // pred_check
      _
    $region35: #{tpu_custom_call.1} parent=1 // pred_check_branch
      %79 = sbr.rel (0) target = $region37
    $region36: #{tpu_custom_call.1} parent=1 // pred_region
      %81 = dma.done [#allocation9], 2048
    $region37: #{tpu_custom_call.1} parent=1 // pred_fallthru
      _
    %v82 = vld [vmem:[#allocation2] sm:$0xf]
    %v83 = vld [vmem:[#allocation2 + $0x4] sm:$0xf]
    %v84 = vld [vmem:[#allocation5] sm:$0xff]
    %v85 = vld [vmem:[#allocation5 + $0x8] sm:$0xff]
    %v86 = vld [vmem:[#allocation5 + $0x10] sm:$0xff]
    %v87 = vld [vmem:[#allocation5 + $0x18] sm:$0xff]
    %v88 = vld [vmem:[#allocation5 + $0x20] sm:$0xff]
    %v89 = vld [vmem:[#allocation5 + $0x28] sm:$0xff]
    %v90 = vld [vmem:[#allocation5 + $0x30] sm:$0xff]
    %v91 = vld [vmem:[#allocation5 + $0x38] sm:$0xff]
    %v92 = vld [vmem:[#allocation5 + $0x40] sm:$0xff]
    %v93 = vld [vmem:[#allocation5 + $0x48] sm:$0xff]
    %v94 = vld [vmem:[#allocation5 + $0x50] sm:$0xff]
    %v95 = vld [vmem:[#allocation5 + $0x58] sm:$0xff]
    %v96 = vld [vmem:[#allocation5 + $0x60] sm:$0xff]
    %v97 = vld [vmem:[#allocation5 + $0x68] sm:$0xff]
    %v98 = vld [vmem:[#allocation5 + $0x70] sm:$0xff]
    %v99 = vld [vmem:[#allocation5 + $0x78] sm:$0xff]
    %v100 = vld [vmem:[#allocation7] sm:$0x3]
    %v102 = vperm.slane %v100, 0
    %v103 = vperm.slane %v100, 1
    %v108 = vunpack.c.l.b16 %v82
    %v109 = vunpack.c.l.b16 %v83
    %v110 = vpack.c.b16 %v109, %v108
    %v128 = vunpack.c.l.b16 %v84
    %v129 = vunpack.c.h.b16 %v84
    %v130 = vunpack.c.l.b16 %v85
    %v131 = vunpack.c.h.b16 %v85
    %v132 = vunpack.c.l.b16 %v86
    %v133 = vunpack.c.h.b16 %v86
    %v134 = vunpack.c.l.b16 %v87
    %v135 = vunpack.c.h.b16 %v87
    %v136 = vunpack.c.l.b16 %v88
    %v137 = vunpack.c.h.b16 %v88
    %v138 = vunpack.c.l.b16 %v89
    %v139 = vunpack.c.h.b16 %v89
    %v140 = vunpack.c.l.b16 %v90
    %v141 = vunpack.c.h.b16 %v90
    %v142 = vunpack.c.l.b16 %v91
    %v143 = vunpack.c.h.b16 %v91
    %v144 = vunpack.c.l.b16 %v92
    %v145 = vunpack.c.h.b16 %v92
    %v146 = vunpack.c.l.b16 %v93
    %v147 = vunpack.c.h.b16 %v93
    %v148 = vunpack.c.l.b16 %v94
    %v149 = vunpack.c.h.b16 %v94
    %v150 = vunpack.c.l.b16 %v95
    %v151 = vunpack.c.h.b16 %v95
    %v152 = vunpack.c.l.b16 %v96
    %v153 = vunpack.c.h.b16 %v96
    %v154 = vunpack.c.l.b16 %v97
    %v155 = vunpack.c.h.b16 %v97
    %v156 = vunpack.c.l.b16 %v98
    %v157 = vunpack.c.h.b16 %v98
    %v158 = vunpack.c.l.b16 %v99
    %v159 = vunpack.c.h.b16 %v99
    %v160 = vpack.c.b16 %v130, %v128
    %v161 = vpack.c.b16 %v131, %v129
    %v162 = vpack.c.b16 %v134, %v132
    %v163 = vpack.c.b16 %v135, %v133
    %v164 = vpack.c.b16 %v138, %v136
    %v165 = vpack.c.b16 %v139, %v137
    %v166 = vpack.c.b16 %v142, %v140
    %v167 = vpack.c.b16 %v143, %v141
    %v168 = vpack.c.b16 %v146, %v144
    %v169 = vpack.c.b16 %v147, %v145
    %v170 = vpack.c.b16 %v150, %v148
    %v171 = vpack.c.b16 %v151, %v149
    %v172 = vpack.c.b16 %v154, %v152
    %v173 = vpack.c.b16 %v155, %v153
    %v174 = vpack.c.b16 %v158, %v156
    %v175 = vpack.c.b16 %v159, %v157
    %192 = vmatpush.bf16.msra.mxu0 %v174
    %193 = vmatpush.bf16.msra.mxu0 %v172
    %194 = vmatpush.bf16.msra.mxu0 %v170
    %195 = vmatpush.bf16.msra.mxu0 %v168
    %196 = vmatpush.bf16.msra.mxu0 %v166
    %197 = vmatpush.bf16.msra.mxu0 %v164
    %198 = vmatpush.bf16.msra.mxu0 %v162
    %199 = vmatpush.bf16.msra.mxu0 %v160
    %200 = vmatmul.bf16.gmra.mxu0 %v110
    %v201 = vpop.f32.mrf.mxu0
    %v202 = vadd.f32 %v102, %v201
    %v203 = vpop.f32.mrf.mxu0
    %v204 = vadd.f32 %v102, %v203
    %205 = vdwg.mxu0
    %206 = vmatpush.bf16.msra.mxu0 %v175
    %207 = vmatpush.bf16.msra.mxu0 %v173
    %208 = vmatpush.bf16.msra.mxu0 %v171
    %209 = vmatpush.bf16.msra.mxu0 %v169
    %210 = vmatpush.bf16.msra.mxu0 %v167
    %211 = vmatpush.bf16.msra.mxu0 %v165
    %212 = vmatpush.bf16.msra.mxu0 %v163
    %213 = vmatpush.bf16.msra.mxu0 %v161
    %214 = vmatmul.bf16.gmra.mxu0 %v110
    %v215 = vpop.f32.mrf.mxu0
    %v216 = vadd.f32 %v103, %v215
    %v217 = vpop.f32.mrf.mxu0
    %v218 = vadd.f32 %v103, %v217
    %219 = vdwg.mxu0
    %v220 = vmax.f32 %v202, 0.0
    %v221 = vmax.f32 %v216, 0.0
    %v222 = vmax.f32 %v204, 0.0
    %v223 = vmax.f32 %v218, 0.0
    %v224 = vpack.c.bf16 %v222, %v220
    %v225 = vpack.c.bf16 %v223, %v221
    %v226 = vld [vmem:[#allocation8] sm:$0xf]
    %v227 = vld [vmem:[#allocation8 + $0x4] sm:$0xf]
    %v228 = vld [vmem:[#allocation8 + $0x8] sm:$0xf]
    %v229 = vld [vmem:[#allocation8 + $0xc] sm:$0xf]
    %v230 = vld [vmem:[#allocation8 + $0x10] sm:$0xf]
    %v231 = vld [vmem:[#allocation8 + $0x14] sm:$0xf]
    %v232 = vld [vmem:[#allocation8 + $0x18] sm:$0xf]
    %v233 = vld [vmem:[#allocation8 + $0x1c] sm:$0xf]
    %v234 = vld [vmem:[#allocation8 + $0x20] sm:$0xf]
    %v235 = vld [vmem:[#allocation8 + $0x24] sm:$0xf]
    %v236 = vld [vmem:[#allocation8 + $0x28] sm:$0xf]
    %v237 = vld [vmem:[#allocation8 + $0x2c] sm:$0xf]
    %v238 = vld [vmem:[#allocation8 + $0x30] sm:$0xf]
    %v239 = vld [vmem:[#allocation8 + $0x34] sm:$0xf]
    %v240 = vld [vmem:[#allocation8 + $0x38] sm:$0xf]
    %v241 = vld [vmem:[#allocation8 + $0x3c] sm:$0xf]
    %v242 = vld [vmem:[#allocation8 + $0x40] sm:$0xf]
    %v243 = vld [vmem:[#allocation8 + $0x44] sm:$0xf]
    %v244 = vld [vmem:[#allocation8 + $0x48] sm:$0xf]
    %v245 = vld [vmem:[#allocation8 + $0x4c] sm:$0xf]
    %v246 = vld [vmem:[#allocation8 + $0x50] sm:$0xf]
    %v247 = vld [vmem:[#allocation8 + $0x54] sm:$0xf]
    %v248 = vld [vmem:[#allocation8 + $0x58] sm:$0xf]
    %v249 = vld [vmem:[#allocation8 + $0x5c] sm:$0xf]
    %v250 = vld [vmem:[#allocation8 + $0x60] sm:$0xf]
    %v251 = vld [vmem:[#allocation8 + $0x64] sm:$0xf]
    %v252 = vld [vmem:[#allocation8 + $0x68] sm:$0xf]
    %v253 = vld [vmem:[#allocation8 + $0x6c] sm:$0xf]
    %v254 = vld [vmem:[#allocation8 + $0x70] sm:$0xf]
    %v255 = vld [vmem:[#allocation8 + $0x74] sm:$0xf]
    %v256 = vld [vmem:[#allocation8 + $0x78] sm:$0xf]
    %v257 = vld [vmem:[#allocation8 + $0x7c] sm:$0xf]
    %v258 = vld [vmem:[%s4] sm:$0x1]
    %v260 = vperm.slane %v258, 0
    %v294 = vunpack.c.l.b16 %v226
    %v295 = vunpack.c.l.b16 %v227
    %v296 = vunpack.c.l.b16 %v228
    %v297 = vunpack.c.l.b16 %v229
    %v298 = vunpack.c.l.b16 %v230
    %v299 = vunpack.c.l.b16 %v231
    %v300 = vunpack.c.l.b16 %v232
    %v301 = vunpack.c.l.b16 %v233
    %v302 = vunpack.c.l.b16 %v234
    %v303 = vunpack.c.l.b16 %v235
    %v304 = vunpack.c.l.b16 %v236
    %v305 = vunpack.c.l.b16 %v237
    %v306 = vunpack.c.l.b16 %v238
    %v307 = vunpack.c.l.b16 %v239
    %v308 = vunpack.c.l.b16 %v240
    %v309 = vunpack.c.l.b16 %v241
    %v310 = vunpack.c.l.b16 %v242
    %v311 = vunpack.c.l.b16 %v243
    %v312 = vunpack.c.l.b16 %v244
    %v313 = vunpack.c.l.b16 %v245
    %v314 = vunpack.c.l.b16 %v246
    %v315 = vunpack.c.l.b16 %v247
    %v316 = vunpack.c.l.b16 %v248
    %v317 = vunpack.c.l.b16 %v249
    %v318 = vunpack.c.l.b16 %v250
    %v319 = vunpack.c.l.b16 %v251
    %v320 = vunpack.c.l.b16 %v252
    %v321 = vunpack.c.l.b16 %v253
    %v322 = vunpack.c.l.b16 %v254
    %v323 = vunpack.c.l.b16 %v255
    %v324 = vunpack.c.l.b16 %v256
    %v325 = vunpack.c.l.b16 %v257
    %v326 = vpack.c.b16 %v295, %v294
    %v327 = vpack.c.b16 %v297, %v296
    %v328 = vpack.c.b16 %v299, %v298
    %v329 = vpack.c.b16 %v301, %v300
    %v330 = vpack.c.b16 %v303, %v302
    %v331 = vpack.c.b16 %v305, %v304
    %v332 = vpack.c.b16 %v307, %v306
    %v333 = vpack.c.b16 %v309, %v308
    %v334 = vpack.c.b16 %v311, %v310
    %v335 = vpack.c.b16 %v313, %v312
    %v336 = vpack.c.b16 %v315, %v314
    %v337 = vpack.c.b16 %v317, %v316
    %v338 = vpack.c.b16 %v319, %v318
    %v339 = vpack.c.b16 %v321, %v320
    %v340 = vpack.c.b16 %v323, %v322
    %v341 = vpack.c.b16 %v325, %v324
    %358 = vmatpush.bf16.msra.mxu0 %v333
    %359 = vmatpush.bf16.msra.mxu0 %v332
    %360 = vmatpush.bf16.msra.mxu0 %v331
    %361 = vmatpush.bf16.msra.mxu0 %v330
    %362 = vmatpush.bf16.msra.mxu0 %v329
    %363 = vmatpush.bf16.msra.mxu0 %v328
    %364 = vmatpush.bf16.msra.mxu0 %v327
    %365 = vmatpush.bf16.msra.mxu0 %v326
    %366 = vmatmul.bf16.gmra.mxu0 %v224
    %v367 = vpop.f32.mrf.mxu0
    %v368 = vadd.f32 %v260, %v367
    %v369 = vpop.f32.mrf.mxu0
    %v370 = vadd.f32 %v260, %v369
    %371 = vdwg.mxu0
    %372 = vmatpush.bf16.msra.mxu0 %v341
    %373 = vmatpush.bf16.msra.mxu0 %v340
    %374 = vmatpush.bf16.msra.mxu0 %v339
    %375 = vmatpush.bf16.msra.mxu0 %v338
    %376 = vmatpush.bf16.msra.mxu0 %v337
    %377 = vmatpush.bf16.msra.mxu0 %v336
    %378 = vmatpush.bf16.msra.mxu0 %v335
    %379 = vmatpush.bf16.msra.mxu0 %v334
    %380 = vmatmul.bf16.gmra.mxu0 %v225
    %v381 = vpop.f32.mrf.mxu0
    %v382 = vadd.f32 %v368, %v381
    %v383 = vpop.f32.mrf.mxu0
    %v384 = vadd.f32 %v370, %v383
    %385 = vdwg.mxu0
    %386 = vst [vmem:[#allocation10] sm:$0xff] %v382
    %387 = vst [vmem:[#allocation10 + $0x8] sm:$0xff] %v384
    // Predicated region
    $region38: #{tpu_custom_call.1} parent=1 // pred_check
      _
    $region39: #{tpu_custom_call.1} parent=1 // pred_check_branch
      %389 = sbr.rel (0) target = $region41
    $region40: #{tpu_custom_call.1} parent=1 // pred_region
      %391 = vsyncadd [#allocation4], 0
      %s392 = sshll.u32 [#allocation10], 4
      %s393 = int_to_ptr.vmem [resolvable:$true] %s392
      %s394 = sshll.u32 %s5, 4
      %s395 = int_to_ptr.hbm [resolvable:$true] %s394
      %400 = dma.vmem_to_hbm [thread:$0]  %s393, 256, %s395, [#allocation4], 128, 128, 8
    $region41: #{tpu_custom_call.1} parent=1 // pred_fallthru
      _
    // Predicated region
    $region42: #{tpu_custom_call.1} parent=1 // pred_check
      _
    $region43: #{tpu_custom_call.1} parent=1 // pred_check_branch
      %402 = sbr.rel (0) target = $region45
    $region44: #{tpu_custom_call.1} parent=1 // pred_region
      %404 = dma.done [#allocation4], 256
    $region45: #{tpu_custom_call.1} parent=1 // pred_fallthru
      _
    %405 = vsyncpa [#allocation3], 1
    %406 = vsyncpa [#allocation6], 1
    %407 = vsyncpa [#allocation9], 1
    %408 = vsyncpa [#allocation4], 1

</llo_original>
